<compile_context>
chip_gen: v5e
topology: v5e:2x2
jax: 0.10.0
libtpu: 0.0.40
codegen_flags: <defaults>
</compile_context>

<pallas_src>
import jax
import jax.numpy as jnp
from jax.experimental import pallas as pl
from jax.experimental.pallas import tpu as pltpu

LANE = 128  # TPU lane width; output padded to a lane multiple for dense stores


def _siamese_kernel(x1_ref, x2_ref, w1_ref, b1_ref, w2_ref, b2_ref,
                    o1_ref, o2_ref):
    # Shared weights: constant index_maps keep them resident across grid steps.
    w1 = w1_ref[...]          # (D, H)   bf16
    b1 = b1_ref[...]          # (1, H)   f32
    w2 = w2_ref[...]          # (H, Ep)  bf16
    b2 = b2_ref[...]          # (1, Ep)  f32

    def embed(x_f32):
        # In-kernel f32 -> bf16 cast for the MXU feed (free VPU slot).
        h = jnp.dot(x_f32.astype(jnp.bfloat16), w1,
                    preferred_element_type=jnp.float32)          # (TB, H) f32
        h = jnp.maximum(h + b1, 0.0)                             # f32 VPU (v5e-safe)
        return jnp.dot(h.astype(jnp.bfloat16), w2,
                       preferred_element_type=jnp.float32) + b2  # (TB, Ep) f32

    # Two MXU passes against the same resident weights -- no sublane concat,
    # no row-sliced stores: each branch gets its own lane-dense output block.
    o1_ref[...] = embed(x1_ref[...]).astype(o1_ref.dtype)
    o2_ref[...] = embed(x2_ref[...]).astype(o2_ref.dtype)


def prepare_params(params):
    """One-time prep: bf16 weights, f32 biases, pad output dim to lane multiple."""
    w1, b1, w2, b2 = params
    e = int(w2.shape[1])
    e_pad = max(LANE, ((e + LANE - 1) // LANE) * LANE)
    # Zero-padded columns => padded output lanes are exactly zero.
    w2p = jnp.zeros((w2.shape[0], e_pad), jnp.float32).at[:, :e].set(w2)
    b2p = jnp.zeros((1, e_pad), jnp.float32).at[:, :e].set(b2.reshape(1, -1))
    return (w1.astype(jnp.bfloat16),
            b1.reshape(1, -1).astype(jnp.float32),
            w2p.astype(jnp.bfloat16),
            b2p,
            e)


def siamese_forward(x1, x2, prepared, *, return_padded=False,
                    out_dtype=jnp.bfloat16):
    """SiameseNet.forward: shared embedding_net applied to x1 and x2."""
    w1, b1, w2p, b2p, e = prepared
    B = x1.shape[0]
    D, H = w1.shape
    e_pad = w2p.shape[1]

    # NCHW -> (B, D) flatten, row-major (same as torch .view(B, -1)).
    # Inputs stay f32 here; the bf16 cast happens inside the kernel.
    x1f = x1.reshape(B, D)
    x2f = x2.reshape(B, D)

    # Batch tiling: 128-row tiles (multiple of 8 -> unmasked f32 sublane tiles)
    # when B allows it, otherwise the whole (tiny) batch in one grid step.
    # TODO(synk): pad B for large batches that are not multiples of 128.
    tb = 128 if (B % 128 == 0) else B
    n_tiles = B // tb

    out1, out2 = pl.pallas_call(
        _siamese_kernel,
        out_shape=(jax.ShapeDtypeStruct((B, e_pad), out_dtype),
                   jax.ShapeDtypeStruct((B, e_pad), out_dtype)),
        grid=(n_tiles,),
        in_specs=[
            pl.BlockSpec((tb, D), lambda i: (i, 0)),       # x1 tile (f32)
            pl.BlockSpec((tb, D), lambda i: (i, 0)),       # x2 tile (f32)
            pl.BlockSpec((D, H), lambda i: (0, 0)),        # W1 (shared, resident)
            pl.BlockSpec((1, H), lambda i: (0, 0)),        # b1 (shared)
            pl.BlockSpec((H, e_pad), lambda i: (0, 0)),    # W2 (shared, lane-padded)
            pl.BlockSpec((1, e_pad), lambda i: (0, 0)),    # b2 (shared, lane-padded)
        ],
        out_specs=(pl.BlockSpec((tb, e_pad), lambda i: (i, 0)),
                   pl.BlockSpec((tb, e_pad), lambda i: (i, 0))),
        compiler_params=pltpu.CompilerParams(
            dimension_semantics=("parallel",)),  # v7x: shard batch tiles over 2 TCs
    )(x1f, x2f, w1, b1, w2p, b2p)

    if return_padded:
        # Lane-dense slabs; padded lanes are exactly zero (consumer slices lazily
        # or fuses a distance/contrastive loss without materializing narrow arrays).
        return out1, out2
    return out1[:, :e], out2[:, :e]


def get_embedding(x, prepared):
    """SiameseNet.get_embedding (shares the same kernel / weights)."""
    return siamese_forward(x, x, prepared)[0]


def _reference_embedding(x, params):
    # Pure f32 reference of the same forward (PyTorch semantics).
    w1, b1, w2, b2 = params
    B = x.shape[0]
    h = jnp.maximum(x.reshape(B, -1) @ w1 + b1, 0.0)
    return h @ w2 + b2


if __name__ == "__main__":
    # Small shapes consistent with an NCHW conv-style input.
    B, C, Himg, Wimg = 2, 4, 16, 16
    D = C * Himg * Wimg          # 1024
    HID, EMB = 32, 16

    key = jax.random.PRNGKey(0)
    k1, k2, kw1, kb1, kw2, kb2 = jax.random.split(key, 6)

    x1 = jax.random.normal(k1, (B, C, Himg, Wimg), dtype=jnp.float32)
    x2 = jax.random.normal(k2, (B, C, Himg, Wimg), dtype=jnp.float32)

    # Parameters stored as [in, out]; equivalent to PyTorch Linear x @ W.T + b.
    w1 = jax.random.normal(kw1, (D, HID), dtype=jnp.float32) * 0.02
    b1 = jax.random.normal(kb1, (1, HID), dtype=jnp.float32) * 0.02
    w2 = jax.random.normal(kw2, (HID, EMB), dtype=jnp.float32) * 0.02
    b2 = jax.random.normal(kb2, (1, EMB), dtype=jnp.float32) * 0.02
    params = (w1, b1, w2, b2)

    prepared = prepare_params(params)
    out1, out2 = siamese_forward(x1, x2, prepared)
    jax.block_until_ready((out1, out2))

    # Correctness check against the f32 reference (bf16 MXU feed + bf16 output
    # -> loose tolerance).
    ref1 = _reference_embedding(x1, params)
    ref2 = _reference_embedding(x2, params)
    assert out1.shape == (B, EMB) and out2.shape == (B, EMB)
    assert jnp.allclose(out1.astype(jnp.float32), ref1, atol=2e-2, rtol=2e-2)
    assert jnp.allclose(out2.astype(jnp.float32), ref2, atol=2e-2, rtol=2e-2)

    print("KERNEL_OK")
</pallas_src>

<mosaic_0001>
module attributes {stable_mosaic.version = 11 : i64} {
  func.func @_siamese_kernel(%arg0: i32, %arg1: memref<2x1024xf32, #tpu.memory_space<vmem>>, %arg2: memref<2x1024xf32, #tpu.memory_space<vmem>>, %arg3: memref<1024x32xbf16, #tpu.memory_space<vmem>>, %arg4: memref<1x32xf32, #tpu.memory_space<vmem>>, %arg5: memref<32x128xbf16, #tpu.memory_space<vmem>>, %arg6: memref<1x128xf32, #tpu.memory_space<vmem>>, %arg7: memref<2x128xbf16, #tpu.memory_space<vmem>>, %arg8: memref<2x128xbf16, #tpu.memory_space<vmem>>) attributes {dimension_semantics = [#tpu.dimension_semantics<parallel>], iteration_bounds = array<i64: 1>, scalar_prefetch = 0 : i64, scratch_operands = 0 : i64, tpu.core_type = #tpu.core_type<tc>, window_params = [{transform_indices = @transform_0, window_bounds = array<i64: 2, 1024>}, {transform_indices = @transform_1, window_bounds = array<i64: 2, 1024>}, {pipeline_mode = #tpu.pipeline_mode<synchronous>, transform_indices = @transform_2, window_bounds = array<i64: 1024, 32>}, {pipeline_mode = #tpu.pipeline_mode<synchronous>, transform_indices = @transform_3, window_bounds = array<i64: 1, 32>}, {pipeline_mode = #tpu.pipeline_mode<synchronous>, transform_indices = @transform_4, window_bounds = array<i64: 32, 128>}, {pipeline_mode = #tpu.pipeline_mode<synchronous>, transform_indices = @transform_5, window_bounds = array<i64: 1, 128>}, {transform_indices = @transform_6, window_bounds = array<i64: 2, 128>}, {transform_indices = @transform_7, window_bounds = array<i64: 2, 128>}]} {
    %c0 = arith.constant 0 : index
    %c0_0 = arith.constant 0 : index
    %0 = vector.load %arg3[%c0, %c0_0] : memref<1024x32xbf16, #tpu.memory_space<vmem>>, vector<1024x32xbf16>
    %c0_1 = arith.constant 0 : index
    %c0_2 = arith.constant 0 : index
    %1 = vector.load %arg4[%c0_1, %c0_2] : memref<1x32xf32, #tpu.memory_space<vmem>>, vector<1x32xf32>
    %c0_3 = arith.constant 0 : index
    %c0_4 = arith.constant 0 : index
    %2 = vector.load %arg5[%c0_3, %c0_4] : memref<32x128xbf16, #tpu.memory_space<vmem>>, vector<32x128xbf16>
    %c0_5 = arith.constant 0 : index
    %c0_6 = arith.constant 0 : index
    %3 = vector.load %arg6[%c0_5, %c0_6] : memref<1x128xf32, #tpu.memory_space<vmem>>, vector<1x128xf32>
    %c0_7 = arith.constant 0 : index
    %c0_8 = arith.constant 0 : index
    %4 = vector.load %arg1[%c0_7, %c0_8] : memref<2x1024xf32, #tpu.memory_space<vmem>>, vector<2x1024xf32>
    %5 = arith.truncf %4 : vector<2x1024xf32> to vector<2x1024xbf16>
    %cst = arith.constant dense<0.000000e+00> : vector<2x32xf32>
    %6 = tpu.matmul %5, %0, %cst {dimension_numbers = #tpu.dot_dimension_numbers<[1], [0], [0], [1], [0, 0, 1, 1], [], []>} : vector<2x1024xbf16>, vector<1024x32xbf16>, vector<2x32xf32> -> vector<2x32xf32>
    %7 = vector.broadcast %1 : vector<1x32xf32> to vector<2x32xf32>
    %8 = arith.addf %6, %7 : vector<2x32xf32>
    %cst_9 = arith.constant 0.000000e+00 : f32
    %9 = vector.broadcast %cst_9 : f32 to vector<2x32xf32>
    %10 = arith.maximumf %8, %9 : vector<2x32xf32>
    %11 = arith.truncf %10 : vector<2x32xf32> to vector<2x32xbf16>
    %cst_10 = arith.constant dense<0.000000e+00> : vector<2x128xf32>
    %12 = tpu.matmul %11, %2, %cst_10 {dimension_numbers = #tpu.dot_dimension_numbers<[1], [0], [0], [1], [0, 0, 1, 1], [], []>} : vector<2x32xbf16>, vector<32x128xbf16>, vector<2x128xf32> -> vector<2x128xf32>
    %13 = vector.broadcast %3 : vector<1x128xf32> to vector<2x128xf32>
    %14 = arith.addf %12, %13 : vector<2x128xf32>
    %15 = arith.truncf %14 : vector<2x128xf32> to vector<2x128xbf16>
    %c0_11 = arith.constant 0 : index
    %c0_12 = arith.constant 0 : index
    %16 = vector.load %arg7[%c0_11, %c0_12] : memref<2x128xbf16, #tpu.memory_space<vmem>>, vector<2x128xbf16>
    tpu.vector_store %arg7[%c0_11, %c0_12], %15 {strides = array<i32>} : memref<2x128xbf16, #tpu.memory_space<vmem>>, vector<2x128xbf16>,
    %c0_13 = arith.constant 0 : index
    %c0_14 = arith.constant 0 : index
    %17 = vector.load %arg2[%c0_13, %c0_14] : memref<2x1024xf32, #tpu.memory_space<vmem>>, vector<2x1024xf32>
    %18 = arith.truncf %17 : vector<2x1024xf32> to vector<2x1024xbf16>
    %cst_15 = arith.constant dense<0.000000e+00> : vector<2x32xf32>
    %19 = tpu.matmul %18, %0, %cst_15 {dimension_numbers = #tpu.dot_dimension_numbers<[1], [0], [0], [1], [0, 0, 1, 1], [], []>} : vector<2x1024xbf16>, vector<1024x32xbf16>, vector<2x32xf32> -> vector<2x32xf32>
    %20 = vector.broadcast %1 : vector<1x32xf32> to vector<2x32xf32>
    %21 = arith.addf %19, %20 : vector<2x32xf32>
    %cst_16 = arith.constant 0.000000e+00 : f32
    %22 = vector.broadcast %cst_16 : f32 to vector<2x32xf32>
    %23 = arith.maximumf %21, %22 : vector<2x32xf32>
    %24 = arith.truncf %23 : vector<2x32xf32> to vector<2x32xbf16>
    %cst_17 = arith.constant dense<0.000000e+00> : vector<2x128xf32>
    %25 = tpu.matmul %24, %2, %cst_17 {dimension_numbers = #tpu.dot_dimension_numbers<[1], [0], [0], [1], [0, 0, 1, 1], [], []>} : vector<2x32xbf16>, vector<32x128xbf16>, vector<2x128xf32> -> vector<2x128xf32>
    %26 = vector.broadcast %3 : vector<1x128xf32> to vector<2x128xf32>
    %27 = arith.addf %25, %26 : vector<2x128xf32>
    %28 = arith.truncf %27 : vector<2x128xf32> to vector<2x128xbf16>
    %c0_18 = arith.constant 0 : index
    %c0_19 = arith.constant 0 : index
    %29 = vector.load %arg8[%c0_18, %c0_19] : memref<2x128xbf16, #tpu.memory_space<vmem>>, vector<2x128xbf16>
    tpu.vector_store %arg8[%c0_18, %c0_19], %28 {strides = array<i32>} : memref<2x128xbf16, #tpu.memory_space<vmem>>, vector<2x128xbf16>,
    return
  }
  func.func @transform_0(%arg0: i32) -> (i32, i32) {
    %c0_i32 = arith.constant 0 : i32
    %c0_i32_0 = arith.constant 0 : i32
    return %arg0, %c0_i32 : i32, i32
  }
  func.func @transform_1(%arg0: i32) -> (i32, i32) {
    %c0_i32 = arith.constant 0 : i32
    %c0_i32_0 = arith.constant 0 : i32
    return %arg0, %c0_i32 : i32, i32
  }
  func.func @transform_2(%arg0: i32) -> (i32, i32) {
    %c0_i32 = arith.constant 0 : i32
    %c0_i32_0 = arith.constant 0 : i32
    %c0_i32_1 = arith.constant 0 : i32
    return %c0_i32, %c0_i32_0 : i32, i32
  }
  func.func @transform_3(%arg0: i32) -> (i32, i32) {
    %c0_i32 = arith.constant 0 : i32
    %c0_i32_0 = arith.constant 0 : i32
    %c0_i32_1 = arith.constant 0 : i32
    return %c0_i32, %c0_i32_0 : i32, i32
  }
  func.func @transform_4(%arg0: i32) -> (i32, i32) {
    %c0_i32 = arith.constant 0 : i32
    %c0_i32_0 = arith.constant 0 : i32
    %c0_i32_1 = arith.constant 0 : i32
    return %c0_i32, %c0_i32_0 : i32, i32
  }
  func.func @transform_5(%arg0: i32) -> (i32, i32) {
    %c0_i32 = arith.constant 0 : i32
    %c0_i32_0 = arith.constant 0 : i32
    %c0_i32_1 = arith.constant 0 : i32
    return %c0_i32, %c0_i32_0 : i32, i32
  }
  func.func @transform_6(%arg0: i32) -> (i32, i32) {
    %c0_i32 = arith.constant 0 : i32
    %c0_i32_0 = arith.constant 0 : i32
    return %arg0, %c0_i32 : i32, i32
  }
  func.func @transform_7(%arg0: i32) -> (i32, i32) {
    %c0_i32 = arith.constant 0 : i32
    %c0_i32_0 = arith.constant 0 : i32
    return %arg0, %c0_i32 : i32, i32
  }
}

</mosaic_0001>

<llo_original>
// kernel: tpu_custom_call.1
$region0: #{tpu_custom_call.1}
  #allocation0 [shape = 'u32[]', space=smem, size = 0x4, offset = 0x4, fixed_abs, tag = 'smem constant byte address 0x4 - core index']
  #allocation1 [shape = 'u32[72,128]{1,0:T(1,128)}', space=vmem, size = 0x9000, scoped, tag = 'internal scratch']
  %s0 = inlined_call_operand.vmem [shape: f32[2,1024], index: 0, kind: input, shape index: {}]
  %s1 = inlined_call_operand.vmem [shape: f32[2,1024], index: 1, kind: input, shape index: {}]
  %s2 = inlined_call_operand.vmem [shape: bf16[1024,32], index: 2, kind: input, shape index: {}]
  %s3 = inlined_call_operand.vmem [shape: f32[1,32], index: 3, kind: input, shape index: {}]
  %s4 = inlined_call_operand.vmem [shape: bf16[32,128], index: 4, kind: input, shape index: {}]
  %s5 = inlined_call_operand.vmem [shape: f32[1,128], index: 5, kind: input, shape index: {}]
  %s6 = inlined_call_operand.hbm [shape: bf16[2,128], index: 6, kind: output, shape index: {0}]
  %s7 = inlined_call_operand.hbm [shape: bf16[2,128], index: 7, kind: output, shape index: {1}]
  %8 = xla_tuple %s6, %s7
  %s9 = sld [smem:[#allocation0]]
  $region42: #{tpu_custom_call.1} parent=0
    _
  %s11 = ssub.s32 1, %s9
  %s12 = scalar_select 0, %s11, %s9
  $region1: #{tpu_custom_call.1} parent=0
    #allocation2 [shape = 'u8[512]{0}', space=vmem, size = 0x400, scoped, tag = 'output window, operand 0, single buffered']
    #allocation3 [shape = 's32[1]{0}', space=sflag, size = 0x4, scoped, tag = 'scoped memory for tpu_custom_call.1']
    #allocation4 [shape = 'u8[512]{0}', space=vmem, size = 0x400, scoped, tag = 'output window, operand 1, single buffered']
    #allocation5 [shape = 's32[1]{0}', space=sflag, size = 0x4, scoped, tag = 'scoped memory for tpu_custom_call.1']
    %13 = vsyncpa [#allocation3], 0
    %14 = vsyncpa [#allocation5], 0
    // Predicated region
    $region2: #{tpu_custom_call.1} parent=1 // pred_check
      _
    $region3: #{tpu_custom_call.1} parent=1 // pred_check_branch
      %16 = sbr.rel (0) target = $region5
    $region4: #{tpu_custom_call.1} parent=1 // pred_region
      _
    $region5: #{tpu_custom_call.1} parent=1 // pred_fallthru
      _
    // Predicated region
    $region6: #{tpu_custom_call.1} parent=1 // pred_check
      _
    $region7: #{tpu_custom_call.1} parent=1 // pred_check_branch
      %18 = sbr.rel (0) target = $region9
    $region8: #{tpu_custom_call.1} parent=1 // pred_region
      _
    $region9: #{tpu_custom_call.1} parent=1 // pred_fallthru
      _
    // Predicated region
    $region10: #{tpu_custom_call.1} parent=1 // pred_check
      _
    $region11: #{tpu_custom_call.1} parent=1 // pred_check_branch
      %20 = sbr.rel (0) target = $region13
    $region12: #{tpu_custom_call.1} parent=1 // pred_region
      _
    $region13: #{tpu_custom_call.1} parent=1 // pred_fallthru
      _
    // Predicated region
    $region14: #{tpu_custom_call.1} parent=1 // pred_check
      _
    $region15: #{tpu_custom_call.1} parent=1 // pred_check_branch
      %22 = sbr.rel (0) target = $region17
    $region16: #{tpu_custom_call.1} parent=1 // pred_region
      _
    $region17: #{tpu_custom_call.1} parent=1 // pred_fallthru
      _
    // Predicated region
    $region18: #{tpu_custom_call.1} parent=1 // pred_check
      _
    $region19: #{tpu_custom_call.1} parent=1 // pred_check_branch
      %24 = sbr.rel (0) target = $region21
    $region20: #{tpu_custom_call.1} parent=1 // pred_region
      _
    $region21: #{tpu_custom_call.1} parent=1 // pred_fallthru
      _
    // Predicated region
    $region22: #{tpu_custom_call.1} parent=1 // pred_check
      _
    $region23: #{tpu_custom_call.1} parent=1 // pred_check_branch
      %26 = sbr.rel (0) target = $region25
    $region24: #{tpu_custom_call.1} parent=1 // pred_region
      _
    $region25: #{tpu_custom_call.1} parent=1 // pred_fallthru
      _
    %v28 = vld [vmem:[%s2] sm:$0xf]
    %v29 = vld [vmem:[%s2 + $0x4] sm:$0xf]
    %v30 = vld [vmem:[%s2 + $0x8] sm:$0xf]
    %v31 = vld [vmem:[%s2 + $0xc] sm:$0xf]
    %v32 = vld [vmem:[%s2 + $0x10] sm:$0xf]
    %v33 = vld [vmem:[%s2 + $0x14] sm:$0xf]
    %v34 = vld [vmem:[%s2 + $0x18] sm:$0xf]
    %v35 = vld [vmem:[%s2 + $0x1c] sm:$0xf]
    %v36 = vld [vmem:[%s2 + $0x20] sm:$0xf]
    %v37 = vld [vmem:[%s2 + $0x24] sm:$0xf]
    %v38 = vld [vmem:[%s2 + $0x28] sm:$0xf]
    %v39 = vld [vmem:[%s2 + $0x2c] sm:$0xf]
    %v40 = vld [vmem:[%s2 + $0x30] sm:$0xf]
    %v41 = vld [vmem:[%s2 + $0x34] sm:$0xf]
    %v42 = vld [vmem:[%s2 + $0x38] sm:$0xf]
    %v43 = vld [vmem:[%s2 + $0x3c] sm:$0xf]
    %v44 = vld [vmem:[%s2 + $0x40] sm:$0xf]
    %v45 = vld [vmem:[%s2 + $0x44] sm:$0xf]
    %v46 = vld [vmem:[%s2 + $0x48] sm:$0xf]
    %v47 = vld [vmem:[%s2 + $0x4c] sm:$0xf]
    %v48 = vld [vmem:[%s2 + $0x50] sm:$0xf]
    %v49 = vld [vmem:[%s2 + $0x54] sm:$0xf]
    %v50 = vld [vmem:[%s2 + $0x58] sm:$0xf]
    %v51 = vld [vmem:[%s2 + $0x5c] sm:$0xf]
    %v52 = vld [vmem:[%s2 + $0x60] sm:$0xf]
    %v53 = vld [vmem:[%s2 + $0x64] sm:$0xf]
    %v54 = vld [vmem:[%s2 + $0x68] sm:$0xf]
    %v55 = vld [vmem:[%s2 + $0x6c] sm:$0xf]
    %v56 = vld [vmem:[%s2 + $0x70] sm:$0xf]
    %v57 = vld [vmem:[%s2 + $0x74] sm:$0xf]
    %v58 = vld [vmem:[%s2 + $0x78] sm:$0xf]
    %v59 = vld [vmem:[%s2 + $0x7c] sm:$0xf]
    %v60 = vld [vmem:[%s2 + $0x80] sm:$0xf]
    %v61 = vld [vmem:[%s2 + $0x84] sm:$0xf]
    %v62 = vld [vmem:[%s2 + $0x88] sm:$0xf]
    %v63 = vld [vmem:[%s2 + $0x8c] sm:$0xf]
    %v64 = vld [vmem:[%s2 + $0x90] sm:$0xf]
    %v65 = vld [vmem:[%s2 + $0x94] sm:$0xf]
    %v66 = vld [vmem:[%s2 + $0x98] sm:$0xf]
    %v67 = vld [vmem:[%s2 + $0x9c] sm:$0xf]
    %v68 = vld [vmem:[%s2 + $0xa0] sm:$0xf]
    %v69 = vld [vmem:[%s2 + $0xa4] sm:$0xf]
    %v70 = vld [vmem:[%s2 + $0xa8] sm:$0xf]
    %v71 = vld [vmem:[%s2 + $0xac] sm:$0xf]
    %v72 = vld [vmem:[%s2 + $0xb0] sm:$0xf]
    %v73 = vld [vmem:[%s2 + $0xb4] sm:$0xf]
    %v74 = vld [vmem:[%s2 + $0xb8] sm:$0xf]
    %v75 = vld [vmem:[%s2 + $0xbc] sm:$0xf]
    %v76 = vld [vmem:[%s2 + $0xc0] sm:$0xf]
    %v77 = vld [vmem:[%s2 + $0xc4] sm:$0xf]
    %v78 = vld [vmem:[%s2 + $0xc8] sm:$0xf]
    %v79 = vld [vmem:[%s2 + $0xcc] sm:$0xf]
    %v80 = vld [vmem:[%s2 + $0xd0] sm:$0xf]
    %v81 = vld [vmem:[%s2 + $0xd4] sm:$0xf]
    %v82 = vld [vmem:[%s2 + $0xd8] sm:$0xf]
    %v83 = vld [vmem:[%s2 + $0xdc] sm:$0xf]
    %v84 = vld [vmem:[%s2 + $0xe0] sm:$0xf]
    %v85 = vld [vmem:[%s2 + $0xe4] sm:$0xf]
    %v86 = vld [vmem:[%s2 + $0xe8] sm:$0xf]
    %v87 = vld [vmem:[%s2 + $0xec] sm:$0xf]
    %v88 = vld [vmem:[%s2 + $0xf0] sm:$0xf]
    %v89 = vld [vmem:[%s2 + $0xf4] sm:$0xf]
    %v90 = vld [vmem:[%s2 + $0xf8] sm:$0xf]
    %v91 = vld [vmem:[%s2 + $0xfc] sm:$0xf]
    %v92 = vld [vmem:[%s2 + $0x100] sm:$0xf]
    %v93 = vld [vmem:[%s2 + $0x104] sm:$0xf]
    %v94 = vld [vmem:[%s2 + $0x108] sm:$0xf]
    %v95 = vld [vmem:[%s2 + $0x10c] sm:$0xf]
    %v96 = vld [vmem:[%s2 + $0x110] sm:$0xf]
    %v97 = vld [vmem:[%s2 + $0x114] sm:$0xf]
    %v98 = vld [vmem:[%s2 + $0x118] sm:$0xf]
    %v99 = vld [vmem:[%s2 + $0x11c] sm:$0xf]
    %v100 = vld [vmem:[%s2 + $0x120] sm:$0xf]
    %v101 = vld [vmem:[%s2 + $0x124] sm:$0xf]
    %v102 = vld [vmem:[%s2 + $0x128] sm:$0xf]
    %v103 = vld [vmem:[%s2 + $0x12c] sm:$0xf]
    %v104 = vld [vmem:[%s2 + $0x130] sm:$0xf]
    %v105 = vld [vmem:[%s2 + $0x134] sm:$0xf]
    %v106 = vld [vmem:[%s2 + $0x138] sm:$0xf]
    %v107 = vld [vmem:[%s2 + $0x13c] sm:$0xf]
    %v108 = vld [vmem:[%s2 + $0x140] sm:$0xf]
    %v109 = vld [vmem:[%s2 + $0x144] sm:$0xf]
    %v110 = vld [vmem:[%s2 + $0x148] sm:$0xf]
    %v111 = vld [vmem:[%s2 + $0x14c] sm:$0xf]
    %v112 = vld [vmem:[%s2 + $0x150] sm:$0xf]
    %v113 = vld [vmem:[%s2 + $0x154] sm:$0xf]
    %v114 = vld [vmem:[%s2 + $0x158] sm:$0xf]
    %v115 = vld [vmem:[%s2 + $0x15c] sm:$0xf]
    %v116 = vld [vmem:[%s2 + $0x160] sm:$0xf]
    %v117 = vld [vmem:[%s2 + $0x164] sm:$0xf]
    %v118 = vld [vmem:[%s2 + $0x168] sm:$0xf]
    %v119 = vld [vmem:[%s2 + $0x16c] sm:$0xf]
    %v120 = vld [vmem:[%s2 + $0x170] sm:$0xf]
    %v121 = vld [vmem:[%s2 + $0x174] sm:$0xf]
    %v122 = vld [vmem:[%s2 + $0x178] sm:$0xf]
    %v123 = vld [vmem:[%s2 + $0x17c] sm:$0xf]
    %v124 = vld [vmem:[%s2 + $0x180] sm:$0xf]
    %v125 = vld [vmem:[%s2 + $0x184] sm:$0xf]
    %v126 = vld [vmem:[%s2 + $0x188] sm:$0xf]
    %v127 = vld [vmem:[%s2 + $0x18c] sm:$0xf]
    %v128 = vld [vmem:[%s2 + $0x190] sm:$0xf]
    %v129 = vld [vmem:[%s2 + $0x194] sm:$0xf]
    %v130 = vld [vmem:[%s2 + $0x198] sm:$0xf]
    %v131 = vld [vmem:[%s2 + $0x19c] sm:$0xf]
    %v132 = vld [vmem:[%s2 + $0x1a0] sm:$0xf]
    %v133 = vld [vmem:[%s2 + $0x1a4] sm:$0xf]
    %v134 = vld [vmem:[%s2 + $0x1a8] sm:$0xf]
    %v135 = vld [vmem:[%s2 + $0x1ac] sm:$0xf]
    %v136 = vld [vmem:[%s2 + $0x1b0] sm:$0xf]
    %v137 = vld [vmem:[%s2 + $0x1b4] sm:$0xf]
    %v138 = vld [vmem:[%s2 + $0x1b8] sm:$0xf]
    %v139 = vld [vmem:[%s2 + $0x1bc] sm:$0xf]
    %v140 = vld [vmem:[%s2 + $0x1c0] sm:$0xf]
    %v141 = vld [vmem:[%s2 + $0x1c4] sm:$0xf]
    %v142 = vld [vmem:[%s2 + $0x1c8] sm:$0xf]
    %v143 = vld [vmem:[%s2 + $0x1cc] sm:$0xf]
    %v144 = vld [vmem:[%s2 + $0x1d0] sm:$0xf]
    %v145 = vld [vmem:[%s2 + $0x1d4] sm:$0xf]
    %v146 = vld [vmem:[%s2 + $0x1d8] sm:$0xf]
    %v147 = vld [vmem:[%s2 + $0x1dc] sm:$0xf]
    %v148 = vld [vmem:[%s2 + $0x1e0] sm:$0xf]
    %v149 = vld [vmem:[%s2 + $0x1e4] sm:$0xf]
    %v150 = vld [vmem:[%s2 + $0x1e8] sm:$0xf]
    %v151 = vld [vmem:[%s2 + $0x1ec] sm:$0xf]
    %v152 = vld [vmem:[%s2 + $0x1f0] sm:$0xf]
    %v153 = vld [vmem:[%s2 + $0x1f4] sm:$0xf]
    %v154 = vld [vmem:[%s2 + $0x1f8] sm:$0xf]
    %v155 = vld [vmem:[%s2 + $0x1fc] sm:$0xf]
    %v156 = vld [vmem:[%s3] sm:$0x1]
    %v157 = vld [vmem:[%s4] sm:$0xf]
    %v158 = vld [vmem:[%s4 + $0x4] sm:$0xf]
    %v159 = vld [vmem:[%s4 + $0x8] sm:$0xf]
    %v160 = vld [vmem:[%s4 + $0xc] sm:$0xf]
    %v161 = vld [vmem:[%s5] sm:$0x1]
    %v162 = vld [vmem:[%s0] sm:$0xff]
    %v163 = vld [vmem:[%s0 + $0x8] sm:$0xff]
    %166 = vst [vmem:[#allocation1] ss:$4 sm:$0xff] %v162
    %s167 = scalar_lea.vmem [#allocation1], 32
    %168 = vst [vmem:[%s167] ss:$4 sm:$0xff] %v163
    %v169 = vld.sshfl [vmem:[#allocation1] sm:$0xff pattern:$0x73625140]
    %v170 = vld.sshfl [vmem:[#allocation1 + $0x8] sm:$0xff pattern:$0x73625140]
    %v171 = vld.sshfl [vmem:[#allocation1 + $0x10] sm:$0xff pattern:$0x73625140]
    %v172 = vld.sshfl [vmem:[#allocation1 + $0x18] sm:$0xff pattern:$0x73625140]
    %v173 = vld.sshfl [vmem:[#allocation1 + $0x20] sm:$0xff pattern:$0x73625140]
    %v174 = vld.sshfl [vmem:[#allocation1 + $0x28] sm:$0xff pattern:$0x73625140]
    %v175 = vld.sshfl [vmem:[#allocation1 + $0x30] sm:$0xff pattern:$0x73625140]
    %v176 = vld.sshfl [vmem:[#allocation1 + $0x38] sm:$0xff pattern:$0x73625140]
    %v185 = vpack.c.bf16 %v169, %v169
    %v186 = vpack.c.bf16 %v170, %v170
    %v187 = vpack.c.bf16 %v171, %v171
    %v188 = vpack.c.bf16 %v172, %v172
    %v189 = vpack.c.bf16 %v173, %v173
    %v190 = vpack.c.bf16 %v174, %v174
    %v191 = vpack.c.bf16 %v175, %v175
    %v192 = vpack.c.bf16 %v176, %v176
    %v194 = vperm.slane %v156, 0
    %v324 = vunpack.c.l.b16 %v28
    %v325 = vunpack.c.l.b16 %v29
    %v326 = vunpack.c.l.b16 %v30
    %v327 = vunpack.c.l.b16 %v31
    %v328 = vunpack.c.l.b16 %v32
    %v329 = vunpack.c.l.b16 %v33
    %v330 = vunpack.c.l.b16 %v34
    %v331 = vunpack.c.l.b16 %v35
    %v332 = vunpack.c.l.b16 %v36
    %v333 = vunpack.c.l.b16 %v37
    %v334 = vunpack.c.l.b16 %v38
    %v335 = vunpack.c.l.b16 %v39
    %v336 = vunpack.c.l.b16 %v40
    %v337 = vunpack.c.l.b16 %v41
    %v338 = vunpack.c.l.b16 %v42
    %v339 = vunpack.c.l.b16 %v43
    %v340 = vunpack.c.l.b16 %v44
    %v341 = vunpack.c.l.b16 %v45
    %v342 = vunpack.c.l.b16 %v46
    %v343 = vunpack.c.l.b16 %v47
    %v344 = vunpack.c.l.b16 %v48
    %v345 = vunpack.c.l.b16 %v49
    %v346 = vunpack.c.l.b16 %v50
    %v347 = vunpack.c.l.b16 %v51
    %v348 = vunpack.c.l.b16 %v52
    %v349 = vunpack.c.l.b16 %v53
    %v350 = vunpack.c.l.b16 %v54
    %v351 = vunpack.c.l.b16 %v55
    %v352 = vunpack.c.l.b16 %v56
    %v353 = vunpack.c.l.b16 %v57
    %v354 = vunpack.c.l.b16 %v58
    %v355 = vunpack.c.l.b16 %v59
    %v356 = vunpack.c.l.b16 %v60
    %v357 = vunpack.c.l.b16 %v61
    %v358 = vunpack.c.l.b16 %v62
    %v359 = vunpack.c.l.b16 %v63
    %v360 = vunpack.c.l.b16 %v64
    %v361 = vunpack.c.l.b16 %v65
    %v362 = vunpack.c.l.b16 %v66
    %v363 = vunpack.c.l.b16 %v67
    %v364 = vunpack.c.l.b16 %v68
    %v365 = vunpack.c.l.b16 %v69
    %v366 = vunpack.c.l.b16 %v70
    %v367 = vunpack.c.l.b16 %v71
    %v368 = vunpack.c.l.b16 %v72
    %v369 = vunpack.c.l.b16 %v73
    %v370 = vunpack.c.l.b16 %v74
    %v371 = vunpack.c.l.b16 %v75
    %v372 = vunpack.c.l.b16 %v76
    %v373 = vunpack.c.l.b16 %v77
    %v374 = vunpack.c.l.b16 %v78
    %v375 = vunpack.c.l.b16 %v79
    %v376 = vunpack.c.l.b16 %v80
    %v377 = vunpack.c.l.b16 %v81
    %v378 = vunpack.c.l.b16 %v82
    %v379 = vunpack.c.l.b16 %v83
    %v380 = vunpack.c.l.b16 %v84
    %v381 = vunpack.c.l.b16 %v85
    %v382 = vunpack.c.l.b16 %v86
    %v383 = vunpack.c.l.b16 %v87
    %v384 = vunpack.c.l.b16 %v88
    %v385 = vunpack.c.l.b16 %v89
    %v386 = vunpack.c.l.b16 %v90
    %v387 = vunpack.c.l.b16 %v91
    %v388 = vunpack.c.l.b16 %v92
    %v389 = vunpack.c.l.b16 %v93
    %v390 = vunpack.c.l.b16 %v94
    %v391 = vunpack.c.l.b16 %v95
    %v392 = vunpack.c.l.b16 %v96
    %v393 = vunpack.c.l.b16 %v97
    %v394 = vunpack.c.l.b16 %v98
    %v395 = vunpack.c.l.b16 %v99
    %v396 = vunpack.c.l.b16 %v100
    %v397 = vunpack.c.l.b16 %v101
    %v398 = vunpack.c.l.b16 %v102
    %v399 = vunpack.c.l.b16 %v103
    %v400 = vunpack.c.l.b16 %v104
    %v401 = vunpack.c.l.b16 %v105
    %v402 = vunpack.c.l.b16 %v106
    %v403 = vunpack.c.l.b16 %v107
    %v404 = vunpack.c.l.b16 %v108
    %v405 = vunpack.c.l.b16 %v109
    %v406 = vunpack.c.l.b16 %v110
    %v407 = vunpack.c.l.b16 %v111
    %v408 = vunpack.c.l.b16 %v112
    %v409 = vunpack.c.l.b16 %v113
    %v410 = vunpack.c.l.b16 %v114
    %v411 = vunpack.c.l.b16 %v115
    %v412 = vunpack.c.l.b16 %v116
    %v413 = vunpack.c.l.b16 %v117
    %v414 = vunpack.c.l.b16 %v118
    %v415 = vunpack.c.l.b16 %v119
    %v416 = vunpack.c.l.b16 %v120
    %v417 = vunpack.c.l.b16 %v121
    %v418 = vunpack.c.l.b16 %v122
    %v419 = vunpack.c.l.b16 %v123
    %v420 = vunpack.c.l.b16 %v124
    %v421 = vunpack.c.l.b16 %v125
    %v422 = vunpack.c.l.b16 %v126
    %v423 = vunpack.c.l.b16 %v127
    %v424 = vunpack.c.l.b16 %v128
    %v425 = vunpack.c.l.b16 %v129
    %v426 = vunpack.c.l.b16 %v130
    %v427 = vunpack.c.l.b16 %v131
    %v428 = vunpack.c.l.b16 %v132
    %v429 = vunpack.c.l.b16 %v133
    %v430 = vunpack.c.l.b16 %v134
    %v431 = vunpack.c.l.b16 %v135
    %v432 = vunpack.c.l.b16 %v136
    %v433 = vunpack.c.l.b16 %v137
    %v434 = vunpack.c.l.b16 %v138
    %v435 = vunpack.c.l.b16 %v139
    %v436 = vunpack.c.l.b16 %v140
    %v437 = vunpack.c.l.b16 %v141
    %v438 = vunpack.c.l.b16 %v142
    %v439 = vunpack.c.l.b16 %v143
    %v440 = vunpack.c.l.b16 %v144
    %v441 = vunpack.c.l.b16 %v145
    %v442 = vunpack.c.l.b16 %v146
    %v443 = vunpack.c.l.b16 %v147
    %v444 = vunpack.c.l.b16 %v148
    %v445 = vunpack.c.l.b16 %v149
    %v446 = vunpack.c.l.b16 %v150
    %v447 = vunpack.c.l.b16 %v151
    %v448 = vunpack.c.l.b16 %v152
    %v449 = vunpack.c.l.b16 %v153
    %v450 = vunpack.c.l.b16 %v154
    %v451 = vunpack.c.l.b16 %v155
    %v452 = vpack.c.b16 %v325, %v324
    %v453 = vpack.c.b16 %v327, %v326
    %v454 = vpack.c.b16 %v329, %v328
    %v455 = vpack.c.b16 %v331, %v330
    %v456 = vpack.c.b16 %v333, %v332
    %v457 = vpack.c.b16 %v335, %v334
    %v458 = vpack.c.b16 %v337, %v336
    %v459 = vpack.c.b16 %v339, %v338
    %v460 = vpack.c.b16 %v341, %v340
    %v461 = vpack.c.b16 %v343, %v342
    %v462 = vpack.c.b16 %v345, %v344
    %v463 = vpack.c.b16 %v347, %v346
    %v464 = vpack.c.b16 %v349, %v348
    %v465 = vpack.c.b16 %v351, %v350
    %v466 = vpack.c.b16 %v353, %v352
    %v467 = vpack.c.b16 %v355, %v354
    %v468 = vpack.c.b16 %v357, %v356
    %v469 = vpack.c.b16 %v359, %v358
    %v470 = vpack.c.b16 %v361, %v360
    %v471 = vpack.c.b16 %v363, %v362
    %v472 = vpack.c.b16 %v365, %v364
    %v473 = vpack.c.b16 %v367, %v366
    %v474 = vpack.c.b16 %v369, %v368
    %v475 = vpack.c.b16 %v371, %v370
    %v476 = vpack.c.b16 %v373, %v372
    %v477 = vpack.c.b16 %v375, %v374
    %v478 = vpack.c.b16 %v377, %v376
    %v479 = vpack.c.b16 %v379, %v378
    %v480 = vpack.c.b16 %v381, %v380
    %v481 = vpack.c.b16 %v383, %v382
    %v482 = vpack.c.b16 %v385, %v384
    %v483 = vpack.c.b16 %v387, %v386
    %v484 = vpack.c.b16 %v389, %v388
    %v485 = vpack.c.b16 %v391, %v390
    %v486 = vpack.c.b16 %v393, %v392
    %v487 = vpack.c.b16 %v395, %v394
    %v488 = vpack.c.b16 %v397, %v396
    %v489 = vpack.c.b16 %v399, %v398
    %v490 = vpack.c.b16 %v401, %v400
    %v491 = vpack.c.b16 %v403, %v402
    %v492 = vpack.c.b16 %v405, %v404
    %v493 = vpack.c.b16 %v407, %v406
    %v494 = vpack.c.b16 %v409, %v408
    %v495 = vpack.c.b16 %v411, %v410
    %v496 = vpack.c.b16 %v413, %v412
    %v497 = vpack.c.b16 %v415, %v414
    %v498 = vpack.c.b16 %v417, %v416
    %v499 = vpack.c.b16 %v419, %v418
    %v500 = vpack.c.b16 %v421, %v420
    %v501 = vpack.c.b16 %v423, %v422
    %v502 = vpack.c.b16 %v425, %v424
    %v503 = vpack.c.b16 %v427, %v426
    %v504 = vpack.c.b16 %v429, %v428
    %v505 = vpack.c.b16 %v431, %v430
    %v506 = vpack.c.b16 %v433, %v432
    %v507 = vpack.c.b16 %v435, %v434
    %v508 = vpack.c.b16 %v437, %v436
    %v509 = vpack.c.b16 %v439, %v438
    %v510 = vpack.c.b16 %v441, %v440
    %v511 = vpack.c.b16 %v443, %v442
    %v512 = vpack.c.b16 %v445, %v444
    %v513 = vpack.c.b16 %v447, %v446
    %v514 = vpack.c.b16 %v449, %v448
    %v515 = vpack.c.b16 %v451, %v450
    %580 = vmatpush.bf16.msra.mxu0 %v459
    %581 = vmatpush.bf16.msra.mxu0 %v458
    %582 = vmatpush.bf16.msra.mxu0 %v457
    %583 = vmatpush.bf16.msra.mxu0 %v456
    %584 = vmatpush.bf16.msra.mxu0 %v455
    %585 = vmatpush.bf16.msra.mxu0 %v454
    %586 = vmatpush.bf16.msra.mxu0 %v453
    %587 = vmatpush.bf16.msra.mxu0 %v452
    %588 = vmatmul.bf16.gmra.mxu0 %v185
    %v589 = vpop.f32.mrf.mxu0
    %v590 = vadd.f32 %v194, %v589
    %v591 = vpop.f32.mrf.mxu0
    %592 = vdwg.mxu0
    %593 = vmatpush.bf16.msra.mxu0 %v467
    %594 = vmatpush.bf16.msra.mxu0 %v466
    %595 = vmatpush.bf16.msra.mxu0 %v465
    %596 = vmatpush.bf16.msra.mxu0 %v464
    %597 = vmatpush.bf16.msra.mxu0 %v463
    %598 = vmatpush.bf16.msra.mxu0 %v462
    %599 = vmatpush.bf16.msra.mxu0 %v461
    %600 = vmatpush.bf16.msra.mxu0 %v460
    %601 = vmatmul.bf16.gmra.mxu0 %v186
    %v602 = vpop.f32.mrf.mxu0
    %v603 = vadd.f32 %v590, %v602
    %v604 = vpop.f32.mrf.mxu0
    %605 = vdwg.mxu0
    %606 = vmatpush.bf16.msra.mxu0 %v475
    %607 = vmatpush.bf16.msra.mxu0 %v474
    %608 = vmatpush.bf16.msra.mxu0 %v473
    %609 = vmatpush.bf16.msra.mxu0 %v472
    %610 = vmatpush.bf16.msra.mxu0 %v471
    %611 = vmatpush.bf16.msra.mxu0 %v470
    %612 = vmatpush.bf16.msra.mxu0 %v469
    %613 = vmatpush.bf16.msra.mxu0 %v468
    %614 = vmatmul.bf16.gmra.mxu0 %v187
    %v615 = vpop.f32.mrf.mxu0
    %v616 = vadd.f32 %v603, %v615
    %v617 = vpop.f32.mrf.mxu0
    %618 = vdwg.mxu0
    %619 = vmatpush.bf16.msra.mxu0 %v483
    %620 = vmatpush.bf16.msra.mxu0 %v482
    %621 = vmatpush.bf16.msra.mxu0 %v481
    %622 = vmatpush.bf16.msra.mxu0 %v480
    %623 = vmatpush.bf16.msra.mxu0 %v479
    %624 = vmatpush.bf16.msra.mxu0 %v478
    %625 = vmatpush.bf16.msra.mxu0 %v477
    %626 = vmatpush.bf16.msra.mxu0 %v476
    %627 = vmatmul.bf16.gmra.mxu0 %v188
    %v628 = vpop.f32.mrf.mxu0
    %v629 = vadd.f32 %v616, %v628
    %v630 = vpop.f32.mrf.mxu0
    %631 = vdwg.mxu0
    %632 = vmatpush.bf16.msra.mxu0 %v491
    %633 = vmatpush.bf16.msra.mxu0 %v490
    %634 = vmatpush.bf16.msra.mxu0 %v489
    %635 = vmatpush.bf16.msra.mxu0 %v488
    %636 = vmatpush.bf16.msra.mxu0 %v487
    %637 = vmatpush.bf16.msra.mxu0 %v486
    %638 = vmatpush.bf16.msra.mxu0 %v485
    %639 = vmatpush.bf16.msra.mxu0 %v484
    %640 = vmatmul.bf16.gmra.mxu0 %v189
    %v641 = vpop.f32.mrf.mxu0
    %v642 = vadd.f32 %v629, %v641
    %v643 = vpop.f32.mrf.mxu0
    %644 = vdwg.mxu0
    %645 = vmatpush.bf16.msra.mxu0 %v499
    %646 = vmatpush.bf16.msra.mxu0 %v498
    %647 = vmatpush.bf16.msra.mxu0 %v497
    %648 = vmatpush.bf16.msra.mxu0 %v496
    %649 = vmatpush.bf16.msra.mxu0 %v495
    %650 = vmatpush.bf16.msra.mxu0 %v494
    %651 = vmatpush.bf16.msra.mxu0 %v493
    %652 = vmatpush.bf16.msra.mxu0 %v492
    %653 = vmatmul.bf16.gmra.mxu0 %v190
    %v654 = vpop.f32.mrf.mxu0
    %v655 = vadd.f32 %v642, %v654
    %v656 = vpop.f32.mrf.mxu0
    %657 = vdwg.mxu0
    %658 = vmatpush.bf16.msra.mxu0 %v507
    %659 = vmatpush.bf16.msra.mxu0 %v506
    %660 = vmatpush.bf16.msra.mxu0 %v505
    %661 = vmatpush.bf16.msra.mxu0 %v504
    %662 = vmatpush.bf16.msra.mxu0 %v503
    %663 = vmatpush.bf16.msra.mxu0 %v502
    %664 = vmatpush.bf16.msra.mxu0 %v501
    %665 = vmatpush.bf16.msra.mxu0 %v500
    %666 = vmatmul.bf16.gmra.mxu0 %v191
    %v667 = vpop.f32.mrf.mxu0
    %v668 = vadd.f32 %v655, %v667
    %v669 = vpop.f32.mrf.mxu0
    %670 = vdwg.mxu0
    %671 = vmatpush.bf16.msra.mxu0 %v515
    %672 = vmatpush.bf16.msra.mxu0 %v514
    %673 = vmatpush.bf16.msra.mxu0 %v513
    %674 = vmatpush.bf16.msra.mxu0 %v512
    %675 = vmatpush.bf16.msra.mxu0 %v511
    %676 = vmatpush.bf16.msra.mxu0 %v510
    %677 = vmatpush.bf16.msra.mxu0 %v509
    %678 = vmatpush.bf16.msra.mxu0 %v508
    %679 = vmatmul.bf16.gmra.mxu0 %v192
    %v680 = vpop.f32.mrf.mxu0
    %v681 = vadd.f32 %v668, %v680
    %v682 = vpop.f32.mrf.mxu0
    %683 = vdwg.mxu0
    %v684 = vmax.f32 %v681, 0.0
    %v685 = vpack.c.bf16 %v684, %v684
    %v687 = vperm.slane %v161, 0
    %v693 = vunpack.c.l.b16 %v157
    %v694 = vunpack.c.l.b16 %v158
    %v695 = vunpack.c.l.b16 %v159
    %v696 = vunpack.c.l.b16 %v160
    %v697 = vpack.c.b16 %v694, %v693
    %v698 = vpack.c.b16 %v696, %v695
    %vm701 = vcmask 261120
    %v703 = vsel %vm701, %v685, 0
    %705 = vmatpush.bf16.msra.mxu0 0
    %706 = vmatpush.bf16.msra.mxu0 0
    %707 = vmatpush.bf16.msra.mxu0 0
    %708 = vmatpush.bf16.msra.mxu0 0
    %709 = vmatpush.bf16.msra.mxu0 0
    %710 = vmatpush.bf16.msra.mxu0 0
    %711 = vmatpush.bf16.msra.mxu0 %v698
    %712 = vmatpush.bf16.msra.mxu0 %v697
    %713 = vmatmul.bf16.gmra.mxu0 %v703
    %v714 = vpop.f32.mrf.mxu0
    %v715 = vadd.f32 %v687, %v714
    %v716 = vpop.f32.mrf.mxu0
    %717 = vdwg.mxu0
    %v718 = vpack.c.bf16 %v715, %v715
    %719 = vst [vmem:[#allocation2] sm:$0x1] %v718
    %v720 = vld [vmem:[%s1] sm:$0xff]
    %v721 = vld [vmem:[%s1 + $0x8] sm:$0xff]
    %724 = vst [vmem:[#allocation1] ss:$4 sm:$0xff] %v720
    %s725 = scalar_lea.vmem [#allocation1], 32
    %726 = vst [vmem:[%s725] ss:$4 sm:$0xff] %v721
    %v727 = vld.sshfl [vmem:[#allocation1] sm:$0xff pattern:$0x73625140]
    %v728 = vld.sshfl [vmem:[#allocation1 + $0x8] sm:$0xff pattern:$0x73625140]
    %v729 = vld.sshfl [vmem:[#allocation1 + $0x10] sm:$0xff pattern:$0x73625140]
    %v730 = vld.sshfl [vmem:[#allocation1 + $0x18] sm:$0xff pattern:$0x73625140]
    %v731 = vld.sshfl [vmem:[#allocation1 + $0x20] sm:$0xff pattern:$0x73625140]
    %v732 = vld.sshfl [vmem:[#allocation1 + $0x28] sm:$0xff pattern:$0x73625140]
    %v733 = vld.sshfl [vmem:[#allocation1 + $0x30] sm:$0xff pattern:$0x73625140]
    %v734 = vld.sshfl [vmem:[#allocation1 + $0x38] sm:$0xff pattern:$0x73625140]
    %v743 = vpack.c.bf16 %v727, %v727
    %v744 = vpack.c.bf16 %v728, %v728
    %v745 = vpack.c.bf16 %v729, %v729
    %v746 = vpack.c.bf16 %v730, %v730
    %v747 = vpack.c.bf16 %v731, %v731
    %v748 = vpack.c.bf16 %v732, %v732
    %v749 = vpack.c.bf16 %v733, %v733
    %v750 = vpack.c.bf16 %v734, %v734
    %751 = vmatpush.bf16.msra.mxu0 %v459
    %752 = vmatpush.bf16.msra.mxu0 %v458
    %753 = vmatpush.bf16.msra.mxu0 %v457
    %754 = vmatpush.bf16.msra.mxu0 %v456
    %755 = vmatpush.bf16.msra.mxu0 %v455
    %756 = vmatpush.bf16.msra.mxu0 %v454
    %757 = vmatpush.bf16.msra.mxu0 %v453
    %758 = vmatpush.bf16.msra.mxu0 %v452
    %759 = vmatmul.bf16.gmra.mxu0 %v743
    %v760 = vpop.f32.mrf.mxu0
    %v761 = vadd.f32 %v194, %v760
    %v762 = vpop.f32.mrf.mxu0
    %763 = vdwg.mxu0
    %764 = vmatpush.bf16.msra.mxu0 %v467
    %765 = vmatpush.bf16.msra.mxu0 %v466
    %766 = vmatpush.bf16.msra.mxu0 %v465
    %767 = vmatpush.bf16.msra.mxu0 %v464
    %768 = vmatpush.bf16.msra.mxu0 %v463
    %769 = vmatpush.bf16.msra.mxu0 %v462
    %770 = vmatpush.bf16.msra.mxu0 %v461
    %771 = vmatpush.bf16.msra.mxu0 %v460
    %772 = vmatmul.bf16.gmra.mxu0 %v744
    %v773 = vpop.f32.mrf.mxu0
    %v774 = vadd.f32 %v761, %v773
    %v775 = vpop.f32.mrf.mxu0
    %776 = vdwg.mxu0
    %777 = vmatpush.bf16.msra.mxu0 %v475
    %778 = vmatpush.bf16.msra.mxu0 %v474
    %779 = vmatpush.bf16.msra.mxu0 %v473
    %780 = vmatpush.bf16.msra.mxu0 %v472
    %781 = vmatpush.bf16.msra.mxu0 %v471
    %782 = vmatpush.bf16.msra.mxu0 %v470
    %783 = vmatpush.bf16.msra.mxu0 %v469
    %784 = vmatpush.bf16.msra.mxu0 %v468
    %785 = vmatmul.bf16.gmra.mxu0 %v745
    %v786 = vpop.f32.mrf.mxu0
    %v787 = vadd.f32 %v774, %v786
    %v788 = vpop.f32.mrf.mxu0
    %789 = vdwg.mxu0
    %790 = vmatpush.bf16.msra.mxu0 %v483
    %791 = vmatpush.bf16.msra.mxu0 %v482
    %792 = vmatpush.bf16.msra.mxu0 %v481
    %793 = vmatpush.bf16.msra.mxu0 %v480
    %794 = vmatpush.bf16.msra.mxu0 %v479
    %795 = vmatpush.bf16.msra.mxu0 %v478
    %796 = vmatpush.bf16.msra.mxu0 %v477
    %797 = vmatpush.bf16.msra.mxu0 %v476
    %798 = vmatmul.bf16.gmra.mxu0 %v746
    %v799 = vpop.f32.mrf.mxu0
    %v800 = vadd.f32 %v787, %v799
    %v801 = vpop.f32.mrf.mxu0
    %802 = vdwg.mxu0
    %803 = vmatpush.bf16.msra.mxu0 %v491
    %804 = vmatpush.bf16.msra.mxu0 %v490
    %805 = vmatpush.bf16.msra.mxu0 %v489
    %806 = vmatpush.bf16.msra.mxu0 %v488
    %807 = vmatpush.bf16.msra.mxu0 %v487
    %808 = vmatpush.bf16.msra.mxu0 %v486
    %809 = vmatpush.bf16.msra.mxu0 %v485
    %810 = vmatpush.bf16.msra.mxu0 %v484
    %811 = vmatmul.bf16.gmra.mxu0 %v747
    %v812 = vpop.f32.mrf.mxu0
    %v813 = vadd.f32 %v800, %v812
    %v814 = vpop.f32.mrf.mxu0
    %815 = vdwg.mxu0
    %816 = vmatpush.bf16.msra.mxu0 %v499
    %817 = vmatpush.bf16.msra.mxu0 %v498
    %818 = vmatpush.bf16.msra.mxu0 %v497
    %819 = vmatpush.bf16.msra.mxu0 %v496
    %820 = vmatpush.bf16.msra.mxu0 %v495
    %821 = vmatpush.bf16.msra.mxu0 %v494
    %822 = vmatpush.bf16.msra.mxu0 %v493
    %823 = vmatpush.bf16.msra.mxu0 %v492
    %824 = vmatmul.bf16.gmra.mxu0 %v748
    %v825 = vpop.f32.mrf.mxu0
    %v826 = vadd.f32 %v813, %v825
    %v827 = vpop.f32.mrf.mxu0
    %828 = vdwg.mxu0
    %829 = vmatpush.bf16.msra.mxu0 %v507
    %830 = vmatpush.bf16.msra.mxu0 %v506
    %831 = vmatpush.bf16.msra.mxu0 %v505
    %832 = vmatpush.bf16.msra.mxu0 %v504
    %833 = vmatpush.bf16.msra.mxu0 %v503
    %834 = vmatpush.bf16.msra.mxu0 %v502
    %835 = vmatpush.bf16.msra.mxu0 %v501
    %836 = vmatpush.bf16.msra.mxu0 %v500
    %837 = vmatmul.bf16.gmra.mxu0 %v749
    %v838 = vpop.f32.mrf.mxu0
    %v839 = vadd.f32 %v826, %v838
    %v840 = vpop.f32.mrf.mxu0
    %841 = vdwg.mxu0
    %842 = vmatpush.bf16.msra.mxu0 %v515
    %843 = vmatpush.bf16.msra.mxu0 %v514
    %844 = vmatpush.bf16.msra.mxu0 %v513
    %845 = vmatpush.bf16.msra.mxu0 %v512
    %846 = vmatpush.bf16.msra.mxu0 %v511
    %847 = vmatpush.bf16.msra.mxu0 %v510
    %848 = vmatpush.bf16.msra.mxu0 %v509
    %849 = vmatpush.bf16.msra.mxu0 %v508
    %850 = vmatmul.bf16.gmra.mxu0 %v750
    %v851 = vpop.f32.mrf.mxu0
    %v852 = vadd.f32 %v839, %v851
    %v853 = vpop.f32.mrf.mxu0
    %854 = vdwg.mxu0
    %v855 = vmax.f32 %v852, 0.0
    %v856 = vpack.c.bf16 %v855, %v855
    %v858 = vsel %vm701, %v856, 0
    %860 = vmatpush.bf16.msra.mxu0 0
    %861 = vmatpush.bf16.msra.mxu0 0
    %862 = vmatpush.bf16.msra.mxu0 0
    %863 = vmatpush.bf16.msra.mxu0 0
    %864 = vmatpush.bf16.msra.mxu0 0
    %865 = vmatpush.bf16.msra.mxu0 0
    %866 = vmatpush.bf16.msra.mxu0 %v698
    %867 = vmatpush.bf16.msra.mxu0 %v697
    %868 = vmatmul.bf16.gmra.mxu0 %v858
    %v869 = vpop.f32.mrf.mxu0
    %v870 = vadd.f32 %v687, %v869
    %v871 = vpop.f32.mrf.mxu0
    %872 = vdwg.mxu0
    %v873 = vpack.c.bf16 %v870, %v870
    %874 = vst [vmem:[#allocation4] sm:$0x1] %v873
    // Predicated region
    $region26: #{tpu_custom_call.1} parent=1 // pred_check
      _
    $region27: #{tpu_custom_call.1} parent=1 // pred_check_branch
      %876 = sbr.rel (0) target = $region29
    $region28: #{tpu_custom_call.1} parent=1 // pred_region
      %878 = vsyncadd [#allocation3], 0
      %s880 = sshll.u32 [#allocation2], 4
      %s881 = int_to_ptr.vmem [resolvable:$true] %s880
      %s882 = sshll.u32 %s6, 4
      %s883 = int_to_ptr.hbm [resolvable:$true] %s882
      %885 = dma.vmem_to_hbm [thread:$0]  %s881, 16, %s883, [#allocation3]
    $region29: #{tpu_custom_call.1} parent=1 // pred_fallthru
      _
    // Predicated region
    $region30: #{tpu_custom_call.1} parent=1 // pred_check
      _
    $region31: #{tpu_custom_call.1} parent=1 // pred_check_branch
      %887 = sbr.rel (0) target = $region33
    $region32: #{tpu_custom_call.1} parent=1 // pred_region
      %889 = vsyncadd [#allocation5], 0
      %s891 = sshll.u32 [#allocation4], 4
      %s892 = int_to_ptr.vmem [resolvable:$true] %s891
      %s893 = sshll.u32 %s7, 4
      %s894 = int_to_ptr.hbm [resolvable:$true] %s893
      %896 = dma.vmem_to_hbm [thread:$0]  %s892, 16, %s894, [#allocation5]
    $region33: #{tpu_custom_call.1} parent=1 // pred_fallthru
      _
    // Predicated region
    $region34: #{tpu_custom_call.1} parent=1 // pred_check
      _
    $region35: #{tpu_custom_call.1} parent=1 // pred_check_branch
      %898 = sbr.rel (0) target = $region37
    $region36: #{tpu_custom_call.1} parent=1 // pred_region
      %900 = dma.done [#allocation3], 16
    $region37: #{tpu_custom_call.1} parent=1 // pred_fallthru
      _
    // Predicated region
    $region38: #{tpu_custom_call.1} parent=1 // pred_check
      _
    $region39: #{tpu_custom_call.1} parent=1 // pred_check_branch
      %902 = sbr.rel (0) target = $region41
    $region40: #{tpu_custom_call.1} parent=1 // pred_region
      %904 = dma.done [#allocation5], 16
    $region41: #{tpu_custom_call.1} parent=1 // pred_fallthru
      _
    %905 = vsyncpa [#allocation3], 1
    %906 = vsyncpa [#allocation5], 1

</llo_original>
